<compile_context>
chip_gen: v7x
topology: tpu7x:2x2x1
jax: 0.10.0
libtpu: 0.0.40
codegen_flags: <defaults>
</compile_context>

<pallas_src>
import functools

import jax
import jax.numpy as jnp
from jax.experimental import pallas as pl
from jax.experimental.pallas import tpu as pltpu

_LANE = 128


def _make_lc1d_kernel(B, I, O, K, TL, prestrided, num_l_tiles, has_bias, out_dtype):
    n_acc = max(1, min(4, K * I))

    def kernel(*refs):
        if has_bias:
            x_ref, w_ref, b_ref, o_ref = refs
        else:
            x_ref, w_ref, o_ref = refs

        # Base output position of this L-tile. TL is always a multiple of 128, so the
        # k = 0 window is 128-lane-aligned (only the +k shift is misaligned).
        if num_l_tiles == 1:
            base = 0
        else:
            base = pl.multiple_of(pl.program_id(0) * TL, _LANE)

        # Independent partial accumulators (per batch) break the vmul->vadd latency
        # chain; accumulator 0 starts from the bias, so there is no epilogue add.
        if has_bias:
            bias_f32 = b_ref[...].astype(jnp.float32)            # (O, TL)
        accs = []
        for b in range(B):
            slabs = []
            for s in range(n_acc):
                if has_bias and s == 0:
                    slabs.append(bias_f32)
                else:
                    slabs.append(jnp.zeros((O, TL), jnp.float32))
            accs.append(slabs)

        # TODO(synk): for very large I*K, replace this static unroll with a chunked
        # lax.fori_loop(..., unroll=4) to bound trace size and vreg live ranges.
        term = 0
        for k in range(K):
            # k-th shifted window of the input (the unfold, done in VMEM).
            if prestrided:
                xk = x_ref[k, :, pl.ds(base, TL)]                # (B*I, TL)
            else:
                xk = x_ref[:, pl.ds(base + k, TL)]               # (B*I, TL)
            xk = xk.astype(jnp.float32)
            for i in range(I):
                # Contiguous, aligned weight slab: O on sublanes, L on lanes.
                w_slab = w_ref[i, k].astype(jnp.float32)          # (O, TL)
                a = term % n_acc
                for b in range(B):
                    row = xk[b * I + i: b * I + i + 1, :]         # (1, TL)
                    accs[b][a] = accs[b][a] + row * w_slab        # VPU broadcast-MAC
                term += 1

        for b in range(B):
            total = accs[b][0]
            for s in range(1, n_acc):
                total = total + accs[b][s]
            o_ref[b, :, :] = total.astype(out_dtype)

    return kernel


def _round_up(v, m):
    return (v + m - 1) // m * m


def _vmem_limit_bytes():
    """Per-generation scoped-VMEM limit (v5e/v6e: 128 MiB physical, v7x: 64 MiB)."""
    try:
        cap = int(pltpu.get_tpu_info().vmem_capacity_bytes)
    except Exception:
        cap = 64 * 1024 * 1024                                   # conservative (v7x)
    return max(32 * 1024 * 1024, min(int(cap * 0.75), 100 * 1024 * 1024))


def _choose_l_tile(L_p, stream_bytes_per_l, unbuffered_bytes_per_l, resident_bytes, budget):
    """Largest multiple-of-128 L-tile dividing L_p that fits the VMEM budget."""
    divisors = sorted((d for d in range(_LANE, L_p + 1, _LANE) if L_p % d == 0),
                      reverse=True)

    def fits(tl, nbuf):
        return (resident_bytes + nbuf * stream_bytes_per_l * tl
                + unbuffered_bytes_per_l * tl) <= budget

    for nbuf in (3, 2):
        for d in divisors:
            if fits(d, nbuf):
                tl = d
                # Prefer >= 2 tiles so both v7x TensorCores get work; the extra grid
                # step (~0.35 us) is negligible against the weight stream.
                if L_p // tl == 1:
                    smaller = [d2 for d2 in divisors if d2 < tl]
                    if smaller:
                        tl = smaller[0]
                return tl, nbuf
    return _LANE, 2


def locally_connected_1d(x, weight, bias=None, *, kernel_size, stride=1,
                         padding=(0, 0), weight_is_iklo=False):
    """LocallyConnected1d forward.

    x:      (B, I, L_in)
    weight: (I, O, K, L_out) (PyTorch-native) or (I, K, O, L_out) if weight_is_iklo.
    bias:   (O, L_out) or None.
    """
    B, I, L_in = x.shape
    K = kernel_size
    pad_l, pad_r = padding
    L_out = (L_in + pad_l + pad_r - (K - 1) - 1) // stride + 1

    if weight_is_iklo:
        w_iklo = weight
    else:
        w_iklo = jnp.transpose(weight, (0, 2, 1, 3))             # (I, K, O, L_out)
    O = w_iklo.shape[2]
    assert w_iklo.shape == (I, K, O, L_out), w_iklo.shape
    has_bias = bias is not None
    out_dtype = x.dtype

    # --- lane-dense L layout: pad L_out up to a multiple of 128 ------------------------
    L_p = max(_round_up(L_out, _LANE), _LANE)
    pad_L = L_p - L_out
    w_p = jnp.pad(w_iklo, ((0, 0), (0, 0), (0, 0), (0, pad_L))) if pad_L else w_iklo
    b_p = None
    if has_bias:
        b_p = jnp.pad(bias, ((0, 0), (0, pad_L))) if pad_L else bias

    # --- input: fold (B, I) onto sublanes; pad L so shifted windows stay in-bounds -----
    x_pad = jnp.pad(x, ((0, 0), (0, 0), (pad_l, pad_r)))
    L_need = (L_p - 1) * stride + K
    if L_need > x_pad.shape[-1]:
        x_pad = jnp.pad(x_pad, ((0, 0), (0, 0), (0, L_need - x_pad.shape[-1])))

    prestrided = stride != 1
    if prestrided:
        # Wrapper-side unfold for stride > 1 (x is tiny relative to the weight stream),
        # so the kernel never needs strided lane slices.
        idx = jnp.arange(L_p) * stride
        x_present = jnp.stack([x_pad[:, :, idx + k] for k in range(K)], axis=0)
        x_present = x_present.reshape(K, B * I, L_p)
    else:
        x_present = x_pad.reshape(B * I, x_pad.shape[-1])

    # --- VMEM-budget-driven L tiling ----------------------------------------------------
    w_item = jnp.dtype(w_p.dtype).itemsize
    x_item = jnp.dtype(x_present.dtype).itemsize
    o_item = jnp.dtype(out_dtype).itemsize
    n_acc = max(1, min(4, K * I))

    resident_x = (_round_up(x_present.shape[-2], 8)
                  * _round_up(x_present.shape[-1], _LANE) * x_item)
    if prestrided:
        resident_x *= K
    stream_per_l = (I * K * _round_up(O, 8) * w_item
                    + (_round_up(O, 8) * jnp.dtype(b_p.dtype).itemsize if has_bias else 0))
    unbuffered_per_l = (2 * B * _round_up(O, 8) * o_item          # double-buffered output
                        + B * n_acc * _round_up(O, 8) * 4)        # f32 partial accumulators

    vmem_limit = _vmem_limit_bytes()
    budget = vmem_limit - 2 * 1024 * 1024
    TL, nbuf = _choose_l_tile(L_p, stream_per_l, unbuffered_per_l, resident_x, budget)
    num_l_tiles = L_p // TL
    use_triple = (nbuf >= 3) and (num_l_tiles >= 3)

    # TODO(synk): if x itself ever outgrows the budget, tile x along L with a
    # (TL*stride + K - 1) halo via memory_space=pl.ANY + manual make_async_copy
    # instead of keeping it resident.
    if resident_x + 2 * stream_per_l * _LANE + unbuffered_per_l * _LANE > vmem_limit:
        raise ValueError("input too large to keep resident in VMEM for this kernel")

    kernel = _make_lc1d_kernel(B, I, O, K, TL, prestrided, num_l_tiles, has_bias, out_dtype)

    def _maybe_buffered(shape, index_map):
        if use_triple:
            return pl.BlockSpec(shape, index_map, pipeline_mode=pl.Buffered(3))
        return pl.BlockSpec(shape, index_map)

    if prestrided:
        x_spec = pl.BlockSpec(x_present.shape, lambda t: (0, 0, 0))
    else:
        x_spec = pl.BlockSpec(x_present.shape, lambda t: (0, 0))

    in_specs = [x_spec, _maybe_buffered((I, K, O, TL), lambda t: (0, 0, 0, t))]
    inputs = [x_present, w_p]
    if has_bias:
        in_specs.append(_maybe_buffered((O, TL), lambda t: (0, t)))
        inputs.append(b_p)

    cost = pl.CostEstimate(
        flops=2 * B * O * L_out * I * K,
        transcendentals=0,
        bytes_accessed=(x_present.size * x_item + w_p.size * w_item
                        + (b_p.size * jnp.dtype(b_p.dtype).itemsize if has_bias else 0)
                        + B * O * L_p * o_item),
    )

    out_p = pl.pallas_call(
        kernel,
        out_shape=jax.ShapeDtypeStruct((B, O, L_p), out_dtype),
        grid=(num_l_tiles,),
        in_specs=in_specs,
        # Output written directly in PyTorch's (B, O, L) layout, lane-dense on L.
        out_specs=pl.BlockSpec((B, O, TL), lambda t: (0, 0, t)),
        compiler_params=pltpu.CompilerParams(
            dimension_semantics=("parallel",),
            vmem_limit_bytes=vmem_limit,
        ),
        cost_estimate=cost,
    )(*inputs)

    return out_p[:, :, :L_out] if pad_L else out_p


def _reference(x, weight, bias, *, kernel_size, stride, padding):
    pad_l, pad_r = padding
    x_pad = jnp.pad(x, ((0, 0), (0, 0), (pad_l, pad_r)))
    L_out = weight.shape[-1]
    idx = jnp.arange(L_out)[:, None] * stride + jnp.arange(kernel_size)[None, :]
    xu = x_pad[:, :, idx]                               # (B, I, L_out, K)
    out = jnp.einsum("bilk,iokl->bol", xu, weight)
    if bias is not None:
        out = out + bias
    return out


if __name__ == "__main__":
    # Module hyperparameters (small, consistent with the PyTorch module).
    in_channels = 4
    out_channels = 8
    seq_len = 16
    kernel_size = 3
    stride = 1
    padding = (1, 1)
    batch = 2

    out_seq_len = (seq_len + sum(padding) - (kernel_size - 1) - 1) // stride + 1

    key = jax.random.PRNGKey(0)
    k_x, k_w, k_b = jax.random.split(key, 3)
    x = jax.random.normal(k_x, (batch, in_channels, seq_len), dtype=jnp.float32)
    # Deterministic parameter init matching nn.init.normal_(std=0.1) shapes.
    weight = 0.1 * jax.random.normal(
        k_w, (in_channels, out_channels, kernel_size, out_seq_len), dtype=jnp.float32)
    bias = 0.1 * jax.random.normal(k_b, (out_channels, out_seq_len), dtype=jnp.float32)

    fn = jax.jit(functools.partial(
        locally_connected_1d,
        kernel_size=kernel_size, stride=stride, padding=padding))
    out = jax.block_until_ready(fn(x, weight, bias))

    ref = _reference(x, weight, bias,
                     kernel_size=kernel_size, stride=stride, padding=padding)
    assert out.shape == (batch, out_channels, out_seq_len), out.shape
    assert jnp.allclose(out, ref, atol=1e-5, rtol=1e-5), float(jnp.max(jnp.abs(out - ref)))

    print("KERNEL_OK")
</pallas_src>

<mosaic_0001>
module attributes {stable_mosaic.version = 11 : i64} {
  func.func @kernel(%arg0: i32, %arg1: memref<8x130xf32, #tpu.memory_space<vmem>>, %arg2: memref<4x3x8x128xf32, #tpu.memory_space<vmem>>, %arg3: memref<8x128xf32, #tpu.memory_space<vmem>>, %arg4: memref<2x8x128xf32, #tpu.memory_space<vmem>>) attributes {dimension_semantics = [#tpu.dimension_semantics<parallel>], iteration_bounds = array<i64: 1>, scalar_prefetch = 0 : i64, scratch_operands = 0 : i64, tpu.core_type = #tpu.core_type<tc>, window_params = [{pipeline_mode = #tpu.pipeline_mode<synchronous>, transform_indices = @transform_0, window_bounds = array<i64: 8, 130>}, {transform_indices = @transform_1, window_bounds = array<i64: 4, 3, 8, 128>}, {transform_indices = @transform_2, window_bounds = array<i64: 8, 128>}, {transform_indices = @transform_3, window_bounds = array<i64: 2, 8, 128>}]} {
    %c0 = arith.constant 0 : index
    %c0_0 = arith.constant 0 : index
    %0 = vector.load %arg3[%c0, %c0_0] : memref<8x128xf32, #tpu.memory_space<vmem>>, vector<8x128xf32>
    %cst = arith.constant 0.000000e+00 : f32
    %1 = vector.broadcast %cst : f32 to vector<8x128xf32>
    %cst_1 = arith.constant 0.000000e+00 : f32
    %2 = vector.broadcast %cst_1 : f32 to vector<8x128xf32>
    %cst_2 = arith.constant 0.000000e+00 : f32
    %3 = vector.broadcast %cst_2 : f32 to vector<8x128xf32>
    %cst_3 = arith.constant 0.000000e+00 : f32
    %4 = vector.broadcast %cst_3 : f32 to vector<8x128xf32>
    %cst_4 = arith.constant 0.000000e+00 : f32
    %5 = vector.broadcast %cst_4 : f32 to vector<8x128xf32>
    %cst_5 = arith.constant 0.000000e+00 : f32
    %6 = vector.broadcast %cst_5 : f32 to vector<8x128xf32>
    %c0_6 = arith.constant 0 : index
    %c0_7 = arith.constant 0 : index
    %7 = vector.load %arg1[%c0_6, %c0_7] : memref<8x130xf32, #tpu.memory_space<vmem>>, vector<8x128xf32>
    %c0_8 = arith.constant 0 : index
    %c0_9 = arith.constant 0 : index
    %c0_10 = arith.constant 0 : index
    %c0_11 = arith.constant 0 : index
    %8 = vector.load %arg2[%c0_8, %c0_9, %c0_10, %c0_11] : memref<4x3x8x128xf32, #tpu.memory_space<vmem>>, vector<1x1x8x128xf32>
    %9 = vector.shape_cast %8 : vector<1x1x8x128xf32> to vector<8x128xf32>
    %10 = vector.extract_strided_slice %7 {offsets = [0, 0], sizes = [1, 128], strides = [1, 1]} : vector<8x128xf32> to vector<1x128xf32>
    %11 = vector.broadcast %10 : vector<1x128xf32> to vector<8x128xf32>
    %12 = arith.mulf %11, %9 : vector<8x128xf32>
    %13 = arith.addf %0, %12 : vector<8x128xf32>
    %14 = vector.extract_strided_slice %7 {offsets = [4, 0], sizes = [1, 128], strides = [1, 1]} : vector<8x128xf32> to vector<1x128xf32>
    %15 = vector.broadcast %14 : vector<1x128xf32> to vector<8x128xf32>
    %16 = arith.mulf %15, %9 : vector<8x128xf32>
    %17 = arith.addf %0, %16 : vector<8x128xf32>
    %c1 = arith.constant 1 : index
    %c0_12 = arith.constant 0 : index
    %c0_13 = arith.constant 0 : index
    %c0_14 = arith.constant 0 : index
    %18 = vector.load %arg2[%c1, %c0_12, %c0_13, %c0_14] : memref<4x3x8x128xf32, #tpu.memory_space<vmem>>, vector<1x1x8x128xf32>
    %19 = vector.shape_cast %18 : vector<1x1x8x128xf32> to vector<8x128xf32>
    %20 = vector.extract_strided_slice %7 {offsets = [1, 0], sizes = [1, 128], strides = [1, 1]} : vector<8x128xf32> to vector<1x128xf32>
    %21 = vector.broadcast %20 : vector<1x128xf32> to vector<8x128xf32>
    %22 = arith.mulf %21, %19 : vector<8x128xf32>
    %23 = arith.addf %1, %22 : vector<8x128xf32>
    %24 = vector.extract_strided_slice %7 {offsets = [5, 0], sizes = [1, 128], strides = [1, 1]} : vector<8x128xf32> to vector<1x128xf32>
    %25 = vector.broadcast %24 : vector<1x128xf32> to vector<8x128xf32>
    %26 = arith.mulf %25, %19 : vector<8x128xf32>
    %27 = arith.addf %4, %26 : vector<8x128xf32>
    %c2 = arith.constant 2 : index
    %c0_15 = arith.constant 0 : index
    %c0_16 = arith.constant 0 : index
    %c0_17 = arith.constant 0 : index
    %28 = vector.load %arg2[%c2, %c0_15, %c0_16, %c0_17] : memref<4x3x8x128xf32, #tpu.memory_space<vmem>>, vector<1x1x8x128xf32>
    %29 = vector.shape_cast %28 : vector<1x1x8x128xf32> to vector<8x128xf32>
    %30 = vector.extract_strided_slice %7 {offsets = [2, 0], sizes = [1, 128], strides = [1, 1]} : vector<8x128xf32> to vector<1x128xf32>
    %31 = vector.broadcast %30 : vector<1x128xf32> to vector<8x128xf32>
    %32 = arith.mulf %31, %29 : vector<8x128xf32>
    %33 = arith.addf %2, %32 : vector<8x128xf32>
    %34 = vector.extract_strided_slice %7 {offsets = [6, 0], sizes = [1, 128], strides = [1, 1]} : vector<8x128xf32> to vector<1x128xf32>
    %35 = vector.broadcast %34 : vector<1x128xf32> to vector<8x128xf32>
    %36 = arith.mulf %35, %29 : vector<8x128xf32>
    %37 = arith.addf %5, %36 : vector<8x128xf32>
    %c3 = arith.constant 3 : index
    %c0_18 = arith.constant 0 : index
    %c0_19 = arith.constant 0 : index
    %c0_20 = arith.constant 0 : index
    %38 = vector.load %arg2[%c3, %c0_18, %c0_19, %c0_20] : memref<4x3x8x128xf32, #tpu.memory_space<vmem>>, vector<1x1x8x128xf32>
    %39 = vector.shape_cast %38 : vector<1x1x8x128xf32> to vector<8x128xf32>
    %40 = vector.extract_strided_slice %7 {offsets = [3, 0], sizes = [1, 128], strides = [1, 1]} : vector<8x128xf32> to vector<1x128xf32>
    %41 = vector.broadcast %40 : vector<1x128xf32> to vector<8x128xf32>
    %42 = arith.mulf %41, %39 : vector<8x128xf32>
    %43 = arith.addf %3, %42 : vector<8x128xf32>
    %44 = vector.extract_strided_slice %7 {offsets = [7, 0], sizes = [1, 128], strides = [1, 1]} : vector<8x128xf32> to vector<1x128xf32>
    %45 = vector.broadcast %44 : vector<1x128xf32> to vector<8x128xf32>
    %46 = arith.mulf %45, %39 : vector<8x128xf32>
    %47 = arith.addf %6, %46 : vector<8x128xf32>
    %c0_21 = arith.constant 0 : index
    %c1_22 = arith.constant 1 : index
    %48 = vector.load %arg1[%c0_21, %c1_22] : memref<8x130xf32, #tpu.memory_space<vmem>>, vector<8x128xf32>
    %c0_23 = arith.constant 0 : index
    %c1_24 = arith.constant 1 : index
    %c0_25 = arith.constant 0 : index
    %c0_26 = arith.constant 0 : index
    %49 = vector.load %arg2[%c0_23, %c1_24, %c0_25, %c0_26] : memref<4x3x8x128xf32, #tpu.memory_space<vmem>>, vector<1x1x8x128xf32>
    %50 = vector.shape_cast %49 : vector<1x1x8x128xf32> to vector<8x128xf32>
    %51 = vector.extract_strided_slice %48 {offsets = [0, 0], sizes = [1, 128], strides = [1, 1]} : vector<8x128xf32> to vector<1x128xf32>
    %52 = vector.broadcast %51 : vector<1x128xf32> to vector<8x128xf32>
    %53 = arith.mulf %52, %50 : vector<8x128xf32>
    %54 = arith.addf %13, %53 : vector<8x128xf32>
    %55 = vector.extract_strided_slice %48 {offsets = [4, 0], sizes = [1, 128], strides = [1, 1]} : vector<8x128xf32> to vector<1x128xf32>
    %56 = vector.broadcast %55 : vector<1x128xf32> to vector<8x128xf32>
    %57 = arith.mulf %56, %50 : vector<8x128xf32>
    %58 = arith.addf %17, %57 : vector<8x128xf32>
    %c1_27 = arith.constant 1 : index
    %c1_28 = arith.constant 1 : index
    %c0_29 = arith.constant 0 : index
    %c0_30 = arith.constant 0 : index
    %59 = vector.load %arg2[%c1_27, %c1_28, %c0_29, %c0_30] : memref<4x3x8x128xf32, #tpu.memory_space<vmem>>, vector<1x1x8x128xf32>
    %60 = vector.shape_cast %59 : vector<1x1x8x128xf32> to vector<8x128xf32>
    %61 = vector.extract_strided_slice %48 {offsets = [1, 0], sizes = [1, 128], strides = [1, 1]} : vector<8x128xf32> to vector<1x128xf32>
    %62 = vector.broadcast %61 : vector<1x128xf32> to vector<8x128xf32>
    %63 = arith.mulf %62, %60 : vector<8x128xf32>
    %64 = arith.addf %23, %63 : vector<8x128xf32>
    %65 = vector.extract_strided_slice %48 {offsets = [5, 0], sizes = [1, 128], strides = [1, 1]} : vector<8x128xf32> to vector<1x128xf32>
    %66 = vector.broadcast %65 : vector<1x128xf32> to vector<8x128xf32>
    %67 = arith.mulf %66, %60 : vector<8x128xf32>
    %68 = arith.addf %27, %67 : vector<8x128xf32>
    %c2_31 = arith.constant 2 : index
    %c1_32 = arith.constant 1 : index
    %c0_33 = arith.constant 0 : index
    %c0_34 = arith.constant 0 : index
    %69 = vector.load %arg2[%c2_31, %c1_32, %c0_33, %c0_34] : memref<4x3x8x128xf32, #tpu.memory_space<vmem>>, vector<1x1x8x128xf32>
    %70 = vector.shape_cast %69 : vector<1x1x8x128xf32> to vector<8x128xf32>
    %71 = vector.extract_strided_slice %48 {offsets = [2, 0], sizes = [1, 128], strides = [1, 1]} : vector<8x128xf32> to vector<1x128xf32>
    %72 = vector.broadcast %71 : vector<1x128xf32> to vector<8x128xf32>
    %73 = arith.mulf %72, %70 : vector<8x128xf32>
    %74 = arith.addf %33, %73 : vector<8x128xf32>
    %75 = vector.extract_strided_slice %48 {offsets = [6, 0], sizes = [1, 128], strides = [1, 1]} : vector<8x128xf32> to vector<1x128xf32>
    %76 = vector.broadcast %75 : vector<1x128xf32> to vector<8x128xf32>
    %77 = arith.mulf %76, %70 : vector<8x128xf32>
    %78 = arith.addf %37, %77 : vector<8x128xf32>
    %c3_35 = arith.constant 3 : index
    %c1_36 = arith.constant 1 : index
    %c0_37 = arith.constant 0 : index
    %c0_38 = arith.constant 0 : index
    %79 = vector.load %arg2[%c3_35, %c1_36, %c0_37, %c0_38] : memref<4x3x8x128xf32, #tpu.memory_space<vmem>>, vector<1x1x8x128xf32>
    %80 = vector.shape_cast %79 : vector<1x1x8x128xf32> to vector<8x128xf32>
    %81 = vector.extract_strided_slice %48 {offsets = [3, 0], sizes = [1, 128], strides = [1, 1]} : vector<8x128xf32> to vector<1x128xf32>
    %82 = vector.broadcast %81 : vector<1x128xf32> to vector<8x128xf32>
    %83 = arith.mulf %82, %80 : vector<8x128xf32>
    %84 = arith.addf %43, %83 : vector<8x128xf32>
    %85 = vector.extract_strided_slice %48 {offsets = [7, 0], sizes = [1, 128], strides = [1, 1]} : vector<8x128xf32> to vector<1x128xf32>
    %86 = vector.broadcast %85 : vector<1x128xf32> to vector<8x128xf32>
    %87 = arith.mulf %86, %80 : vector<8x128xf32>
    %88 = arith.addf %47, %87 : vector<8x128xf32>
    %c0_39 = arith.constant 0 : index
    %c2_40 = arith.constant 2 : index
    %89 = vector.load %arg1[%c0_39, %c2_40] : memref<8x130xf32, #tpu.memory_space<vmem>>, vector<8x128xf32>
    %c0_41 = arith.constant 0 : index
    %c2_42 = arith.constant 2 : index
    %c0_43 = arith.constant 0 : index
    %c0_44 = arith.constant 0 : index
    %90 = vector.load %arg2[%c0_41, %c2_42, %c0_43, %c0_44] : memref<4x3x8x128xf32, #tpu.memory_space<vmem>>, vector<1x1x8x128xf32>
    %91 = vector.shape_cast %90 : vector<1x1x8x128xf32> to vector<8x128xf32>
    %92 = vector.extract_strided_slice %89 {offsets = [0, 0], sizes = [1, 128], strides = [1, 1]} : vector<8x128xf32> to vector<1x128xf32>
    %93 = vector.broadcast %92 : vector<1x128xf32> to vector<8x128xf32>
    %94 = arith.mulf %93, %91 : vector<8x128xf32>
    %95 = arith.addf %54, %94 : vector<8x128xf32>
    %96 = vector.extract_strided_slice %89 {offsets = [4, 0], sizes = [1, 128], strides = [1, 1]} : vector<8x128xf32> to vector<1x128xf32>
    %97 = vector.broadcast %96 : vector<1x128xf32> to vector<8x128xf32>
    %98 = arith.mulf %97, %91 : vector<8x128xf32>
    %99 = arith.addf %58, %98 : vector<8x128xf32>
    %c1_45 = arith.constant 1 : index
    %c2_46 = arith.constant 2 : index
    %c0_47 = arith.constant 0 : index
    %c0_48 = arith.constant 0 : index
    %100 = vector.load %arg2[%c1_45, %c2_46, %c0_47, %c0_48] : memref<4x3x8x128xf32, #tpu.memory_space<vmem>>, vector<1x1x8x128xf32>
    %101 = vector.shape_cast %100 : vector<1x1x8x128xf32> to vector<8x128xf32>
    %102 = vector.extract_strided_slice %89 {offsets = [1, 0], sizes = [1, 128], strides = [1, 1]} : vector<8x128xf32> to vector<1x128xf32>
    %103 = vector.broadcast %102 : vector<1x128xf32> to vector<8x128xf32>
    %104 = arith.mulf %103, %101 : vector<8x128xf32>
    %105 = arith.addf %64, %104 : vector<8x128xf32>
    %106 = vector.extract_strided_slice %89 {offsets = [5, 0], sizes = [1, 128], strides = [1, 1]} : vector<8x128xf32> to vector<1x128xf32>
    %107 = vector.broadcast %106 : vector<1x128xf32> to vector<8x128xf32>
    %108 = arith.mulf %107, %101 : vector<8x128xf32>
    %109 = arith.addf %68, %108 : vector<8x128xf32>
    %c2_49 = arith.constant 2 : index
    %c2_50 = arith.constant 2 : index
    %c0_51 = arith.constant 0 : index
    %c0_52 = arith.constant 0 : index
    %110 = vector.load %arg2[%c2_49, %c2_50, %c0_51, %c0_52] : memref<4x3x8x128xf32, #tpu.memory_space<vmem>>, vector<1x1x8x128xf32>
    %111 = vector.shape_cast %110 : vector<1x1x8x128xf32> to vector<8x128xf32>
    %112 = vector.extract_strided_slice %89 {offsets = [2, 0], sizes = [1, 128], strides = [1, 1]} : vector<8x128xf32> to vector<1x128xf32>
    %113 = vector.broadcast %112 : vector<1x128xf32> to vector<8x128xf32>
    %114 = arith.mulf %113, %111 : vector<8x128xf32>
    %115 = arith.addf %74, %114 : vector<8x128xf32>
    %116 = vector.extract_strided_slice %89 {offsets = [6, 0], sizes = [1, 128], strides = [1, 1]} : vector<8x128xf32> to vector<1x128xf32>
    %117 = vector.broadcast %116 : vector<1x128xf32> to vector<8x128xf32>
    %118 = arith.mulf %117, %111 : vector<8x128xf32>
    %119 = arith.addf %78, %118 : vector<8x128xf32>
    %c3_53 = arith.constant 3 : index
    %c2_54 = arith.constant 2 : index
    %c0_55 = arith.constant 0 : index
    %c0_56 = arith.constant 0 : index
    %120 = vector.load %arg2[%c3_53, %c2_54, %c0_55, %c0_56] : memref<4x3x8x128xf32, #tpu.memory_space<vmem>>, vector<1x1x8x128xf32>
    %121 = vector.shape_cast %120 : vector<1x1x8x128xf32> to vector<8x128xf32>
    %122 = vector.extract_strided_slice %89 {offsets = [3, 0], sizes = [1, 128], strides = [1, 1]} : vector<8x128xf32> to vector<1x128xf32>
    %123 = vector.broadcast %122 : vector<1x128xf32> to vector<8x128xf32>
    %124 = arith.mulf %123, %121 : vector<8x128xf32>
    %125 = arith.addf %84, %124 : vector<8x128xf32>
    %126 = vector.extract_strided_slice %89 {offsets = [7, 0], sizes = [1, 128], strides = [1, 1]} : vector<8x128xf32> to vector<1x128xf32>
    %127 = vector.broadcast %126 : vector<1x128xf32> to vector<8x128xf32>
    %128 = arith.mulf %127, %121 : vector<8x128xf32>
    %129 = arith.addf %88, %128 : vector<8x128xf32>
    %130 = arith.addf %95, %105 : vector<8x128xf32>
    %131 = arith.addf %130, %115 : vector<8x128xf32>
    %132 = arith.addf %131, %125 : vector<8x128xf32>
    %c0_57 = arith.constant 0 : index
    %c0_58 = arith.constant 0 : index
    %c0_59 = arith.constant 0 : index
    %133 = vector.load %arg4[%c0_57, %c0_58, %c0_59] : memref<2x8x128xf32, #tpu.memory_space<vmem>>, vector<1x8x128xf32>
    %134 = vector.shape_cast %133 : vector<1x8x128xf32> to vector<8x128xf32>
    %135 = vector.shape_cast %132 : vector<8x128xf32> to vector<1x8x128xf32>
    tpu.vector_store %arg4[%c0_57, %c0_58, %c0_59], %135 {strides = array<i32>} : memref<2x8x128xf32, #tpu.memory_space<vmem>>, vector<1x8x128xf32>,
    %136 = arith.addf %99, %109 : vector<8x128xf32>
    %137 = arith.addf %136, %119 : vector<8x128xf32>
    %138 = arith.addf %137, %129 : vector<8x128xf32>
    %c1_60 = arith.constant 1 : index
    %c0_61 = arith.constant 0 : index
    %c0_62 = arith.constant 0 : index
    %139 = vector.load %arg4[%c1_60, %c0_61, %c0_62] : memref<2x8x128xf32, #tpu.memory_space<vmem>>, vector<1x8x128xf32>
    %140 = vector.shape_cast %139 : vector<1x8x128xf32> to vector<8x128xf32>
    %141 = vector.shape_cast %138 : vector<8x128xf32> to vector<1x8x128xf32>
    tpu.vector_store %arg4[%c1_60, %c0_61, %c0_62], %141 {strides = array<i32>} : memref<2x8x128xf32, #tpu.memory_space<vmem>>, vector<1x8x128xf32>,
    return
  }
  func.func @transform_0(%arg0: i32) -> (i32, i32) {
    %c0_i32 = arith.constant 0 : i32
    %c0_i32_0 = arith.constant 0 : i32
    %c0_i32_1 = arith.constant 0 : i32
    return %c0_i32, %c0_i32_0 : i32, i32
  }
  func.func @transform_1(%arg0: i32) -> (i32, i32, i32, i32) {
    %c0_i32 = arith.constant 0 : i32
    %c0_i32_0 = arith.constant 0 : i32
    %c0_i32_1 = arith.constant 0 : i32
    %c0_i32_2 = arith.constant 0 : i32
    return %c0_i32, %c0_i32_0, %c0_i32_1, %arg0 : i32, i32, i32, i32
  }
  func.func @transform_2(%arg0: i32) -> (i32, i32) {
    %c0_i32 = arith.constant 0 : i32
    %c0_i32_0 = arith.constant 0 : i32
    return %c0_i32, %arg0 : i32, i32
  }
  func.func @transform_3(%arg0: i32) -> (i32, i32, i32) {
    %c0_i32 = arith.constant 0 : i32
    %c0_i32_0 = arith.constant 0 : i32
    %c0_i32_1 = arith.constant 0 : i32
    return %c0_i32, %c0_i32_0, %arg0 : i32, i32, i32
  }
}

</mosaic_0001>

<llo_original>
// kernel: locally_connected_1d.1
$region0: #{locally_connected_1d.1}
  #allocation0 [shape = 'u32[]', space=smem, size = 0x4, offset = 0x4, fixed_abs, tag = 'smem constant byte address 0x4 - core index']
  #allocation1 [shape = 'u32[144,128]{1,0:T(1,128)}', space=vmem, size = 0x12000, scoped, tag = 'internal scratch']
  %s0 = inlined_call_operand.vmem [shape: f32[8,130], index: 0, kind: input, shape index: {}]
  %s1 = inlined_call_operand.vmem [shape: f32[4,3,8,128], index: 1, kind: input, shape index: {}]
  %s2 = inlined_call_operand.vmem [shape: f32[8,128], index: 2, kind: input, shape index: {}]
  %s3 = inlined_call_operand.hbm [shape: f32[2,8,128], index: 3, kind: output, shape index: {}]
  %s4 = sld [smem:[#allocation0]]
  $region22: #{locally_connected_1d.1} parent=0
    _
  %s6 = ssub.s32 1, %s4
  %s7 = scalar_select 0, %s6, %s4
  $region1: #{locally_connected_1d.1} parent=0
    #allocation2 [shape = 'u8[8192]{0}', space=vmem, size = 0x2000, scoped, tag = 'output window, operand 0, single buffered']
    #allocation3 [shape = 's32[1]{0}', space=sflag, size = 0x4, scoped, tag = 'scoped memory for locally_connected_1d.1']
    %8 = vsyncpa [#allocation3], 0
    // Predicated region
    $region2: #{locally_connected_1d.1} parent=1 // pred_check
      _
    $region3: #{locally_connected_1d.1} parent=1 // pred_check_branch
      %10 = sbr.rel (0) target = $region5
    $region4: #{locally_connected_1d.1} parent=1 // pred_region
      _
    $region5: #{locally_connected_1d.1} parent=1 // pred_fallthru
      _
    // Predicated region
    $region6: #{locally_connected_1d.1} parent=1 // pred_check
      _
    $region7: #{locally_connected_1d.1} parent=1 // pred_check_branch
      %12 = sbr.rel (0) target = $region9
    $region8: #{locally_connected_1d.1} parent=1 // pred_region
      _
    $region9: #{locally_connected_1d.1} parent=1 // pred_fallthru
      _
    // Predicated region
    $region10: #{locally_connected_1d.1} parent=1 // pred_check
      _
    $region11: #{locally_connected_1d.1} parent=1 // pred_check_branch
      %14 = sbr.rel (0) target = $region13
    $region12: #{locally_connected_1d.1} parent=1 // pred_region
      _
    $region13: #{locally_connected_1d.1} parent=1 // pred_fallthru
      _
    %v15 = vld [vmem:[%s2] sm:$0xff]
    %v16 = vld [vmem:[%s0] sm:$0xff]
    %v17 = vld [vmem:[%s1] sm:$0xff]
    %v18 = vlaneseq
    %v19 = vshrl.u32 %v18, 7
    %v20 = vsub.s32 0, %v19
    %v21 = vrot.slane %v16, %v20
    %v22 = vmul.f32 %v21, %v17
    %v23 = vadd.f32 %v15, %v22
    %v24 = vlaneseq
    %v25 = vshrl.u32 %v24, 7
    %v26 = vsub.s32 4, %v25
    %v27 = vrot.slane %v16, %v26
    %v28 = vmul.f32 %v27, %v17
    %v29 = vadd.f32 %v15, %v28
    %s30 = scalar_lea.vmem %s1, 24
    %v31 = vld [vmem:[%s30] sm:$0xff]
    %v32 = vlaneseq
    %v33 = vshrl.u32 %v32, 7
    %v34 = vsub.s32 1, %v33
    %v35 = vrot.slane %v16, %v34
    %v36 = vmul.f32 %v35, %v31
    %v37 = vadd.f32 %v36, 0.0
    %v38 = vlaneseq
    %v39 = vshrl.u32 %v38, 7
    %v40 = vsub.s32 5, %v39
    %v41 = vrot.slane %v16, %v40
    %v42 = vmul.f32 %v41, %v31
    %v43 = vadd.f32 %v42, 0.0
    %s44 = scalar_lea.vmem %s1, 48
    %v45 = vld [vmem:[%s44] sm:$0xff]
    %v46 = vlaneseq
    %v47 = vshrl.u32 %v46, 7
    %v48 = vsub.s32 2, %v47
    %v49 = vrot.slane %v16, %v48
    %v50 = vmul.f32 %v49, %v45
    %v51 = vadd.f32 %v50, 0.0
    %v52 = vlaneseq
    %v53 = vshrl.u32 %v52, 7
    %v54 = vsub.s32 6, %v53
    %v55 = vrot.slane %v16, %v54
    %v56 = vmul.f32 %v55, %v45
    %v57 = vadd.f32 %v56, 0.0
    %s58 = scalar_lea.vmem %s1, 72
    %v59 = vld [vmem:[%s58] sm:$0xff]
    %v60 = vlaneseq
    %v61 = vshrl.u32 %v60, 7
    %v62 = vsub.s32 3, %v61
    %v63 = vrot.slane %v16, %v62
    %v64 = vmul.f32 %v63, %v59
    %v65 = vadd.f32 %v64, 0.0
    %v66 = vlaneseq
    %v67 = vshrl.u32 %v66, 7
    %v68 = vsub.s32 7, %v67
    %v69 = vrot.slane %v16, %v68
    %v70 = vmul.f32 %v69, %v59
    %v71 = vadd.f32 %v70, 0.0
    %v72 = vld [vmem:[%s0 + $0x8] sm:$0xff]
    %s73 = scalar_lea.vmem %s1, 8
    %v74 = vld [vmem:[%s73] sm:$0xff]
    %v75 = vlaneseq
    %v76 = vshrl.u32 %v75, 7
    %v77 = vsub.s32 0, %v76
    %v78 = vrot.slane %v72, %v77
    %80 = vrot.lane.b32.xlu0 %v74, 1
    %v81 = vpop.permute.xlu0 %80
    %v83 = vmul.f32 %v21, %v81
    %v84 = vmul.f32 %v78, %v81
    %87 = vrot.lane.b32.xlu0 %v83, 127
    %v88 = vpop.permute.xlu0 %87
    %89 = vrot.lane.b32.xlu0 %v84, 127
    %v90 = vpop.permute.xlu0 %89
    %vm91 = vcmask 1039360
    %v92 = vsel %vm91, %v88, %v90
    %v94 = vadd.f32 %v23, %v92
    %v95 = vlaneseq
    %v96 = vshrl.u32 %v95, 7
    %v97 = vsub.s32 4, %v96
    %v98 = vrot.slane %v72, %v97
    %v99 = vmul.f32 %v27, %v81
    %v100 = vmul.f32 %v98, %v81
    %103 = vrot.lane.b32.xlu0 %v99, 127
    %v104 = vpop.permute.xlu0 %103
    %105 = vrot.lane.b32.xlu0 %v100, 127
    %v106 = vpop.permute.xlu0 %105
    %v107 = vsel %vm91, %v104, %v106
    %v109 = vadd.f32 %v29, %v107
    %s110 = scalar_lea.vmem %s1, 32
    %v111 = vld [vmem:[%s110] sm:$0xff]
    %v112 = vlaneseq
    %v113 = vshrl.u32 %v112, 7
    %v114 = vsub.s32 1, %v113
    %v115 = vrot.slane %v72, %v114
    %117 = vrot.lane.b32.xlu0 %v111, 1
    %v118 = vpop.permute.xlu0 %117
    %v120 = vmul.f32 %v35, %v118
    %v121 = vmul.f32 %v115, %v118
    %124 = vrot.lane.b32.xlu0 %v120, 127
    %v125 = vpop.permute.xlu0 %124
    %126 = vrot.lane.b32.xlu0 %v121, 127
    %v127 = vpop.permute.xlu0 %126
    %v128 = vsel %vm91, %v125, %v127
    %v130 = vadd.f32 %v37, %v128
    %v131 = vlaneseq
    %v132 = vshrl.u32 %v131, 7
    %v133 = vsub.s32 5, %v132
    %v134 = vrot.slane %v72, %v133
    %v135 = vmul.f32 %v41, %v118
    %v136 = vmul.f32 %v134, %v118
    %139 = vrot.lane.b32.xlu0 %v135, 127
    %v140 = vpop.permute.xlu0 %139
    %141 = vrot.lane.b32.xlu0 %v136, 127
    %v142 = vpop.permute.xlu0 %141
    %v143 = vsel %vm91, %v140, %v142
    %v145 = vadd.f32 %v43, %v143
    %s146 = scalar_lea.vmem %s1, 56
    %v147 = vld [vmem:[%s146] sm:$0xff]
    %v148 = vlaneseq
    %v149 = vshrl.u32 %v148, 7
    %v150 = vsub.s32 2, %v149
    %v151 = vrot.slane %v72, %v150
    %153 = vrot.lane.b32.xlu0 %v147, 1
    %v154 = vpop.permute.xlu0 %153
    %v156 = vmul.f32 %v49, %v154
    %v157 = vmul.f32 %v151, %v154
    %160 = vrot.lane.b32.xlu0 %v156, 127
    %v161 = vpop.permute.xlu0 %160
    %162 = vrot.lane.b32.xlu0 %v157, 127
    %v163 = vpop.permute.xlu0 %162
    %v164 = vsel %vm91, %v161, %v163
    %v166 = vadd.f32 %v51, %v164
    %v167 = vlaneseq
    %v168 = vshrl.u32 %v167, 7
    %v169 = vsub.s32 6, %v168
    %v170 = vrot.slane %v72, %v169
    %v171 = vmul.f32 %v55, %v154
    %v172 = vmul.f32 %v170, %v154
    %175 = vrot.lane.b32.xlu0 %v171, 127
    %v176 = vpop.permute.xlu0 %175
    %177 = vrot.lane.b32.xlu0 %v172, 127
    %v178 = vpop.permute.xlu0 %177
    %v179 = vsel %vm91, %v176, %v178
    %v181 = vadd.f32 %v57, %v179
    %s182 = scalar_lea.vmem %s1, 80
    %v183 = vld [vmem:[%s182] sm:$0xff]
    %v184 = vlaneseq
    %v185 = vshrl.u32 %v184, 7
    %v186 = vsub.s32 3, %v185
    %v187 = vrot.slane %v72, %v186
    %189 = vrot.lane.b32.xlu0 %v183, 1
    %v190 = vpop.permute.xlu0 %189
    %v192 = vmul.f32 %v63, %v190
    %v193 = vmul.f32 %v187, %v190
    %196 = vrot.lane.b32.xlu0 %v192, 127
    %v197 = vpop.permute.xlu0 %196
    %198 = vrot.lane.b32.xlu0 %v193, 127
    %v199 = vpop.permute.xlu0 %198
    %v200 = vsel %vm91, %v197, %v199
    %v202 = vadd.f32 %v65, %v200
    %v203 = vlaneseq
    %v204 = vshrl.u32 %v203, 7
    %v205 = vsub.s32 7, %v204
    %v206 = vrot.slane %v72, %v205
    %v207 = vmul.f32 %v69, %v190
    %v208 = vmul.f32 %v206, %v190
    %211 = vrot.lane.b32.xlu0 %v207, 127
    %v212 = vpop.permute.xlu0 %211
    %213 = vrot.lane.b32.xlu0 %v208, 127
    %v214 = vpop.permute.xlu0 %213
    %v215 = vsel %vm91, %v212, %v214
    %v217 = vadd.f32 %v71, %v215
    %s218 = scalar_lea.vmem %s1, 16
    %v219 = vld [vmem:[%s218] sm:$0xff]
    %221 = vrot.lane.b32.xlu0 %v219, 2
    %v222 = vpop.permute.xlu0 %221
    %v224 = vmul.f32 %v21, %v222
    %v225 = vmul.f32 %v78, %v222
    %228 = vrot.lane.b32.xlu0 %v224, 126
    %v229 = vpop.permute.xlu0 %228
    %230 = vrot.lane.b32.xlu0 %v225, 126
    %v231 = vpop.permute.xlu0 %230
    %vm232 = vcmask 1031168
    %v233 = vsel %vm232, %v229, %v231
    %v235 = vadd.f32 %v94, %v233
    %v236 = vmul.f32 %v27, %v222
    %v237 = vmul.f32 %v98, %v222
    %240 = vrot.lane.b32.xlu0 %v236, 126
    %v241 = vpop.permute.xlu0 %240
    %242 = vrot.lane.b32.xlu0 %v237, 126
    %v243 = vpop.permute.xlu0 %242
    %v244 = vsel %vm232, %v241, %v243
    %v246 = vadd.f32 %v109, %v244
    %s247 = scalar_lea.vmem %s1, 40
    %v248 = vld [vmem:[%s247] sm:$0xff]
    %250 = vrot.lane.b32.xlu0 %v248, 2
    %v251 = vpop.permute.xlu0 %250
    %v253 = vmul.f32 %v35, %v251
    %v254 = vmul.f32 %v115, %v251
    %257 = vrot.lane.b32.xlu0 %v253, 126
    %v258 = vpop.permute.xlu0 %257
    %259 = vrot.lane.b32.xlu0 %v254, 126
    %v260 = vpop.permute.xlu0 %259
    %v261 = vsel %vm232, %v258, %v260
    %v263 = vadd.f32 %v130, %v261
    %v264 = vmul.f32 %v41, %v251
    %v265 = vmul.f32 %v134, %v251
    %268 = vrot.lane.b32.xlu0 %v264, 126
    %v269 = vpop.permute.xlu0 %268
    %270 = vrot.lane.b32.xlu0 %v265, 126
    %v271 = vpop.permute.xlu0 %270
    %v272 = vsel %vm232, %v269, %v271
    %v274 = vadd.f32 %v145, %v272
    %s275 = scalar_lea.vmem %s1, 64
    %v276 = vld [vmem:[%s275] sm:$0xff]
    %278 = vrot.lane.b32.xlu0 %v276, 2
    %v279 = vpop.permute.xlu0 %278
    %v281 = vmul.f32 %v49, %v279
    %v282 = vmul.f32 %v151, %v279
    %285 = vrot.lane.b32.xlu0 %v281, 126
    %v286 = vpop.permute.xlu0 %285
    %287 = vrot.lane.b32.xlu0 %v282, 126
    %v288 = vpop.permute.xlu0 %287
    %v289 = vsel %vm232, %v286, %v288
    %v291 = vadd.f32 %v166, %v289
    %v292 = vmul.f32 %v55, %v279
    %v293 = vmul.f32 %v170, %v279
    %296 = vrot.lane.b32.xlu0 %v292, 126
    %v297 = vpop.permute.xlu0 %296
    %298 = vrot.lane.b32.xlu0 %v293, 126
    %v299 = vpop.permute.xlu0 %298
    %v300 = vsel %vm232, %v297, %v299
    %v302 = vadd.f32 %v181, %v300
    %s303 = scalar_lea.vmem %s1, 88
    %v304 = vld [vmem:[%s303] sm:$0xff]
    %306 = vrot.lane.b32.xlu0 %v304, 2
    %v307 = vpop.permute.xlu0 %306
    %v309 = vmul.f32 %v63, %v307
    %v310 = vmul.f32 %v187, %v307
    %313 = vrot.lane.b32.xlu0 %v309, 126
    %v314 = vpop.permute.xlu0 %313
    %315 = vrot.lane.b32.xlu0 %v310, 126
    %v316 = vpop.permute.xlu0 %315
    %v317 = vsel %vm232, %v314, %v316
    %v319 = vadd.f32 %v202, %v317
    %v320 = vmul.f32 %v69, %v307
    %v321 = vmul.f32 %v206, %v307
    %324 = vrot.lane.b32.xlu0 %v320, 126
    %v325 = vpop.permute.xlu0 %324
    %326 = vrot.lane.b32.xlu0 %v321, 126
    %v327 = vpop.permute.xlu0 %326
    %v328 = vsel %vm232, %v325, %v327
    %v330 = vadd.f32 %v217, %v328
    %v331 = vadd.f32 %v235, %v263
    %v332 = vadd.f32 %v331, %v291
    %v333 = vadd.f32 %v332, %v319
    %334 = vst [vmem:[#allocation2] sm:$0xff] %v333
    %v335 = vadd.f32 %v246, %v274
    %v336 = vadd.f32 %v335, %v302
    %v337 = vadd.f32 %v336, %v330
    %s338 = scalar_lea.vmem [#allocation2], 8
    %339 = vst [vmem:[%s338] sm:$0xff] %v337
    // Predicated region
    $region14: #{locally_connected_1d.1} parent=1 // pred_check
      _
    $region15: #{locally_connected_1d.1} parent=1 // pred_check_branch
      %341 = sbr.rel (0) target = $region17
    $region16: #{locally_connected_1d.1} parent=1 // pred_region
      %s343 = ssub.s32 256, 256
      %344 = vsyncadd [#allocation3], %s343
      %s345 = sshll.u32 [#allocation2], 4
      %s346 = int_to_ptr.vmem [resolvable:$true] %s345
      %351 = dma.vmem_to_hbm [thread:$0]  %s346, 256, %s3, [#allocation3], 128, 128, 8
    $region17: #{locally_connected_1d.1} parent=1 // pred_fallthru
      _
    // Predicated region
    $region18: #{locally_connected_1d.1} parent=1 // pred_check
      _
    $region19: #{locally_connected_1d.1} parent=1 // pred_check_branch
      %353 = sbr.rel (0) target = $region21
    $region20: #{locally_connected_1d.1} parent=1 // pred_region
      %354 = dma.done [#allocation3], 256
    $region21: #{locally_connected_1d.1} parent=1 // pred_fallthru
      _
    %355 = vsyncpa [#allocation3], 1

</llo_original>
